<compile_context>
chip_gen: v7x
topology: tpu7x:2x2x1
jax: 0.10.0
libtpu: 0.0.40
codegen_flags: <defaults>
</compile_context>

<pallas_src>
import jax
import jax.numpy as jnp
from jax.experimental import pallas as pl
from jax.experimental.pallas import tpu as pltpu

EPS = 1e-5          # nn.InstanceNorm2d default
NEG_SLOPE = 0.2     # LeakyReLU slope
_VMEM_LIMIT = 32 * 1024 * 1024


def _round_up(x, m):
    return ((x + m - 1) // m) * m


# ---------------------------------------------------------------------------
# Pallas kernels
# ---------------------------------------------------------------------------
def _make_conv_bias_kernel(leaky):
    """Tiled matmul + bias (+ optional LeakyReLU).  grid = (B, nHW, nK), K last."""
    def kernel(p_ref, w_ref, b_ref, o_ref, acc_ref):
        k = pl.program_id(2)

        @pl.when(k == 0)
        def _():
            acc_ref[...] = jnp.zeros_like(acc_ref)

        acc_ref[...] += jnp.dot(p_ref[0], w_ref[...],
                                preferred_element_type=jnp.float32)

        @pl.when(k == pl.num_programs(2) - 1)
        def _():
            x = acc_ref[...] + b_ref[...]
            if leaky:
                x = jnp.where(x >= 0, x, NEG_SLOPE * x)
            o_ref[0] = x

    return kernel


def _conv_stats_kernel(p_ref, w_ref, o_ref, stat_ref, acc_ref):
    """Tiled matmul (no bias: InstanceNorm cancels it exactly) that also emits
    per-HW-tile sum / sum-of-squares for the InstanceNorm finalize pass."""
    k = pl.program_id(2)

    @pl.when(k == 0)
    def _():
        acc_ref[...] = jnp.zeros_like(acc_ref)

    acc_ref[...] += jnp.dot(p_ref[0], w_ref[...],
                            preferred_element_type=jnp.float32)

    @pl.when(k == pl.num_programs(2) - 1)
    def _():
        x = acc_ref[...]
        o_ref[0] = x
        s1 = jnp.sum(x, axis=0, keepdims=True)          # (1, Coutp)
        s2 = jnp.sum(x * x, axis=0, keepdims=True)      # (1, Coutp)
        stat_ref[0, 0] = jnp.concatenate([s1, s2], axis=0)


def _in_leaky_kernel(x_ref, mean_ref, inv_ref, o_ref):
    """Fused InstanceNorm normalize + LeakyReLU (f32 elementwise)."""
    x = (x_ref[0] - mean_ref[0]) * inv_ref[0]
    o_ref[0] = jnp.where(x >= 0, x, NEG_SLOPE * x)


# ---------------------------------------------------------------------------
# JAX glue: zero padding + im2col (layout only, no hot-path compute)
# ---------------------------------------------------------------------------
def _im2col(x, kh, kw, stride):
    """x: (B, C, Hp, Wp) -> (B, Ho*Wo, C*kh*kw); flattening order (c, i, j)
    matches PyTorch weight.reshape(Cout, Cin*kh*kw)."""
    B, C, Hp, Wp = x.shape
    Ho = (Hp - kh) // stride + 1
    Wo = (Wp - kw) // stride + 1
    cols = []
    for i in range(kh):
        for j in range(kw):
            cols.append(x[:, :, i:i + stride * (Ho - 1) + 1:stride,
                                j:j + stride * (Wo - 1) + 1:stride])
    patches = jnp.stack(cols, axis=0).reshape(kh * kw, B, C, Ho * Wo)
    patches = patches.transpose(1, 3, 2, 0)            # (B, Ho*Wo, C, kh*kw)
    return patches.reshape(B, Ho * Wo, C * kh * kw), Ho, Wo


def conv2d_layer(x, w, b, *, stride, padding=1, mode,
                 thw_target=256, tk_target=1024):
    """mode: 'leaky'   -> conv + bias + LeakyReLU
             'in_leaky'-> conv + InstanceNorm + LeakyReLU (bias dropped: exact no-op)
             'linear'  -> conv + bias
       x: (B, Cin, H, W); w: (Cout, Cin, kh, kw); b: (Cout,)."""
    Cout, Cin, kh, kw = w.shape
    B = x.shape[0]

    xp = jnp.pad(x, ((0, 0), (0, 0), (padding, padding), (padding, padding)))
    patches, Ho, Wo = _im2col(xp, kh, kw, stride)
    HW = Ho * Wo
    K = Cin * kh * kw

    # Lane-dense / tile-friendly padding.
    Coutp = _round_up(Cout, 128)
    tHW = min(thw_target, _round_up(HW, 8))
    HWp = _round_up(HW, tHW)
    tK = min(tk_target, _round_up(K, 128))
    Kp = _round_up(K, tK)
    nHW, nK = HWp // tHW, Kp // tK

    # bf16 MXU operands; zero pad contributes nothing to the matmul / stats.
    patches = jnp.pad(patches, ((0, 0), (0, HWp - HW), (0, Kp - K))).astype(jnp.bfloat16)
    w2d = jnp.pad(w.reshape(Cout, K).T,
                  ((0, Kp - K), (0, Coutp - Cout))).astype(jnp.bfloat16)

    p_spec = pl.BlockSpec((1, tHW, tK), lambda bb, h, k: (bb, h, k))
    w_spec = pl.BlockSpec((tK, Coutp), lambda bb, h, k: (k, 0))
    o_spec = pl.BlockSpec((1, tHW, Coutp), lambda bb, h, k: (bb, h, 0))
    cparams = pltpu.CompilerParams(
        dimension_semantics=("parallel", "parallel", "arbitrary"),
        vmem_limit_bytes=_VMEM_LIMIT)

    if mode == "in_leaky":
        stat_spec = pl.BlockSpec((1, 1, 2, Coutp), lambda bb, h, k: (bb, h, 0, 0))
        conv, stats = pl.pallas_call(
            _conv_stats_kernel,
            grid=(B, nHW, nK),
            in_specs=[p_spec, w_spec],
            out_specs=[o_spec, stat_spec],
            out_shape=[jax.ShapeDtypeStruct((B, HWp, Coutp), jnp.float32),
                       jax.ShapeDtypeStruct((B, nHW, 2, Coutp), jnp.float32)],
            scratch_shapes=[pltpu.VMEM((tHW, Coutp), jnp.float32)],
            compiler_params=cparams,
        )(patches, w2d)

        # Tiny per-(image, channel) reduction; divide by the TRUE HW (padded
        # rows are exact zeros because bias is not added before the norm).
        sums = jnp.sum(stats, axis=1)                     # (B, 2, Coutp)
        mean = sums[:, 0] / float(HW)
        var = jnp.maximum(sums[:, 1] / float(HW) - mean * mean, 0.0)
        inv = jax.lax.rsqrt(var + EPS)
        mean3 = mean.reshape(B, 1, Coutp)
        inv3 = inv.reshape(B, 1, Coutp)

        out = pl.pallas_call(
            _in_leaky_kernel,
            grid=(B, nHW),
            in_specs=[pl.BlockSpec((1, tHW, Coutp), lambda bb, h: (bb, h, 0)),
                      pl.BlockSpec((1, 1, Coutp), lambda bb, h: (bb, 0, 0)),
                      pl.BlockSpec((1, 1, Coutp), lambda bb, h: (bb, 0, 0))],
            out_specs=pl.BlockSpec((1, tHW, Coutp), lambda bb, h: (bb, h, 0)),
            out_shape=jax.ShapeDtypeStruct((B, HWp, Coutp), jnp.float32),
            compiler_params=pltpu.CompilerParams(
                dimension_semantics=("parallel", "parallel"),
                vmem_limit_bytes=_VMEM_LIMIT),
        )(conv, mean3, inv3)
    else:
        bias2d = jnp.pad(b, (0, Coutp - Cout)).reshape(1, Coutp).astype(jnp.float32)
        kernel = _make_conv_bias_kernel(leaky=(mode == "leaky"))
        out = pl.pallas_call(
            kernel,
            grid=(B, nHW, nK),
            in_specs=[p_spec, w_spec,
                      pl.BlockSpec((1, Coutp), lambda bb, h, k: (0, 0))],
            out_specs=o_spec,
            out_shape=jax.ShapeDtypeStruct((B, HWp, Coutp), jnp.float32),
            scratch_shapes=[pltpu.VMEM((tHW, Coutp), jnp.float32)],
            compiler_params=cparams,
        )(patches, w2d, bias2d)

    out = out[:, :HW, :Cout]                              # strip HW / Cout padding
    return out.transpose(0, 2, 1).reshape(B, Cout, Ho, Wo)


# ---------------------------------------------------------------------------
# Discriminator: parameters + forward
# ---------------------------------------------------------------------------
def make_params(key, channels):
    shapes = [(64, channels, 4, 4), (128, 64, 4, 4), (256, 128, 4, 4),
              (512, 256, 4, 4), (1, 512, 4, 4)]
    keys = jax.random.split(key, len(shapes))
    params = {}
    for idx, (k, shp) in enumerate(zip(keys, shapes), start=1):
        kw_, kb_ = jax.random.split(k)
        fan_in = shp[1] * shp[2] * shp[3]
        params[f"c{idx}_w"] = jax.random.normal(kw_, shp, jnp.float32) / jnp.sqrt(float(fan_in))
        params[f"c{idx}_b"] = 0.01 * jax.random.normal(kb_, (shp[0],), jnp.float32)
    return params


def discriminator_forward(params, x):
    h = conv2d_layer(x, params["c1_w"], params["c1_b"], stride=2, mode="leaky")
    h = conv2d_layer(h, params["c2_w"], params["c2_b"], stride=2, mode="in_leaky")
    h = conv2d_layer(h, params["c3_w"], params["c3_b"], stride=2, mode="in_leaky")
    h = conv2d_layer(h, params["c4_w"], params["c4_b"], stride=1, mode="in_leaky")
    return conv2d_layer(h, params["c5_w"], params["c5_b"], stride=1, mode="linear")


# ---------------------------------------------------------------------------
# Pure-JAX reference (f32) for a correctness check
# ---------------------------------------------------------------------------
def _ref_conv(x, w, b, stride, padding=1):
    y = jax.lax.conv_general_dilated(
        x, w, window_strides=(stride, stride),
        padding=[(padding, padding), (padding, padding)],
        dimension_numbers=("NCHW", "OIHW", "NCHW"))
    return y + b.reshape(1, -1, 1, 1)


def _ref_instance_norm(y):
    m = jnp.mean(y, axis=(2, 3), keepdims=True)
    v = jnp.var(y, axis=(2, 3), keepdims=True)     # biased, matches InstanceNorm2d
    return (y - m) * jax.lax.rsqrt(v + EPS)


def _ref_leaky(y):
    return jnp.where(y >= 0, y, NEG_SLOPE * y)


def reference_forward(params, x):
    h = _ref_leaky(_ref_conv(x, params["c1_w"], params["c1_b"], 2))
    h = _ref_leaky(_ref_instance_norm(_ref_conv(h, params["c2_w"], params["c2_b"], 2)))
    h = _ref_leaky(_ref_instance_norm(_ref_conv(h, params["c3_w"], params["c3_b"], 2)))
    h = _ref_leaky(_ref_instance_norm(_ref_conv(h, params["c4_w"], params["c4_b"], 1)))
    return _ref_conv(h, params["c5_w"], params["c5_b"], 1)


if __name__ == "__main__":
    # Smallest "nice" shapes: the 4x4 / stride-2,2,2,1,1 stack needs spatial >= 24
    # for every conv output to stay >= 1 pixel; 64 keeps all layers well formed.
    B, C, H, W = 2, 3, 64, 64

    key = jax.random.PRNGKey(0)
    k_params, k_x = jax.random.split(key)
    params = make_params(k_params, C)
    x = jax.random.normal(k_x, (B, C, H, W), jnp.float32)

    y = jax.block_until_ready(discriminator_forward(params, x))

    assert y.shape == (B, 1, 6, 6), y.shape
    assert y.dtype == jnp.float32
    assert bool(jnp.all(jnp.isfinite(y)))

    y_ref = reference_forward(params, x)
    err = float(jnp.max(jnp.abs(y - y_ref)))
    scale = float(jnp.max(jnp.abs(y_ref)))
    assert err <= 0.1 * max(scale, 1.0), (err, scale)   # bf16-matmul tolerance

    print("KERNEL_OK")
</pallas_src>

<mosaic_0001>
module attributes {stable_mosaic.version = 11 : i64} {
  func.func @kernel(%arg0: i32, %arg1: i32, %arg2: i32, %arg3: memref<1x256x128xbf16, #tpu.memory_space<vmem>>, %arg4: memref<128x128xbf16, #tpu.memory_space<vmem>>, %arg5: memref<1x128xf32, #tpu.memory_space<vmem>>, %arg6: memref<1x256x128xf32, #tpu.memory_space<vmem>>, %arg7: memref<256x128xf32, #tpu.memory_space<vmem>>) attributes {dimension_semantics = [#tpu.dimension_semantics<parallel>, #tpu.dimension_semantics<parallel>, #tpu.dimension_semantics<arbitrary>], iteration_bounds = array<i64: 2, 4, 1>, scalar_prefetch = 0 : i64, scratch_operands = 1 : i64, tpu.core_type = #tpu.core_type<tc>, window_params = [{transform_indices = @transform_0, window_bounds = array<i64: 1, 256, 128>}, {transform_indices = @transform_1, window_bounds = array<i64: 128, 128>}, {pipeline_mode = #tpu.pipeline_mode<synchronous>, transform_indices = @transform_2, window_bounds = array<i64: 1, 128>}, {transform_indices = @transform_3, window_bounds = array<i64: 1, 256, 128>}]} {
    %c0_i32 = arith.constant 0 : i32
    %0 = arith.cmpi eq, %arg2, %c0_i32 : i32
    %1 = arith.extui %0 : i1 to i32
    %c0_i32_0 = arith.constant 0 : i32
    %2 = arith.cmpi ne, %1, %c0_i32_0 : i32
    scf.if %2 {
      %cst_11 = arith.constant 0.000000e+00 : f32
      %13 = vector.broadcast %cst_11 : f32 to vector<256x128xf32>
      %c0_12 = arith.constant 0 : index
      %c0_13 = arith.constant 0 : index
      %14 = vector.load %arg7[%c0_12, %c0_13] : memref<256x128xf32, #tpu.memory_space<vmem>>, vector<256x128xf32>
      tpu.vector_store %arg7[%c0_12, %c0_13], %13 {strides = array<i32>} : memref<256x128xf32, #tpu.memory_space<vmem>>, vector<256x128xf32>,
    } else {
    }
    %c0 = arith.constant 0 : index
    %c0_1 = arith.constant 0 : index
    %3 = vector.load %arg7[%c0, %c0_1] : memref<256x128xf32, #tpu.memory_space<vmem>>, vector<256x128xf32>
    %c0_2 = arith.constant 0 : index
    %c0_3 = arith.constant 0 : index
    %c0_4 = arith.constant 0 : index
    %4 = vector.load %arg3[%c0_2, %c0_3, %c0_4] : memref<1x256x128xbf16, #tpu.memory_space<vmem>>, vector<1x256x128xbf16>
    %5 = vector.shape_cast %4 : vector<1x256x128xbf16> to vector<256x128xbf16>
    %c0_5 = arith.constant 0 : index
    %c0_6 = arith.constant 0 : index
    %6 = vector.load %arg4[%c0_5, %c0_6] : memref<128x128xbf16, #tpu.memory_space<vmem>>, vector<128x128xbf16>
    %cst = arith.constant dense<0.000000e+00> : vector<256x128xf32>
    %7 = tpu.matmul %5, %6, %cst {dimension_numbers = #tpu.dot_dimension_numbers<[1], [0], [0], [1], [0, 0, 1, 1], [], []>} : vector<256x128xbf16>, vector<128x128xbf16>, vector<256x128xf32> -> vector<256x128xf32>
    %8 = arith.addf %3, %7 : vector<256x128xf32>
    %c0_7 = arith.constant 0 : index
    %c0_8 = arith.constant 0 : index
    %9 = vector.load %arg7[%c0_7, %c0_8] : memref<256x128xf32, #tpu.memory_space<vmem>>, vector<256x128xf32>
    tpu.vector_store %arg7[%c0_7, %c0_8], %8 {strides = array<i32>} : memref<256x128xf32, #tpu.memory_space<vmem>>, vector<256x128xf32>,
    %c0_i32_9 = arith.constant 0 : i32
    %10 = arith.cmpi eq, %arg2, %c0_i32_9 : i32
    %11 = arith.extui %10 : i1 to i32
    %c0_i32_10 = arith.constant 0 : i32
    %12 = arith.cmpi ne, %11, %c0_i32_10 : i32
    scf.if %12 {
      %c0_11 = arith.constant 0 : index
      %c0_12 = arith.constant 0 : index
      %13 = vector.load %arg7[%c0_11, %c0_12] : memref<256x128xf32, #tpu.memory_space<vmem>>, vector<256x128xf32>
      %c0_13 = arith.constant 0 : index
      %c0_14 = arith.constant 0 : index
      %14 = vector.load %arg5[%c0_13, %c0_14] : memref<1x128xf32, #tpu.memory_space<vmem>>, vector<1x128xf32>
      %15 = vector.broadcast %14 : vector<1x128xf32> to vector<256x128xf32>
      %16 = arith.addf %13, %15 : vector<256x128xf32>
      %cst_15 = arith.constant 0.000000e+00 : f32
      %17 = vector.broadcast %cst_15 : f32 to vector<256x128xf32>
      %18 = arith.cmpf oge, %16, %17 : vector<256x128xf32>
      %cst_16 = arith.constant 2.000000e-01 : f32
      %19 = vector.broadcast %cst_16 : f32 to vector<256x128xf32>
      %20 = arith.mulf %19, %16 : vector<256x128xf32>
      %21 = arith.select %18, %16, %20 : vector<256x128xi1>, vector<256x128xf32>
      %c0_17 = arith.constant 0 : index
      %c0_18 = arith.constant 0 : index
      %c0_19 = arith.constant 0 : index
      %22 = vector.load %arg6[%c0_17, %c0_18, %c0_19] : memref<1x256x128xf32, #tpu.memory_space<vmem>>, vector<1x256x128xf32>
      %23 = vector.shape_cast %22 : vector<1x256x128xf32> to vector<256x128xf32>
      %24 = vector.shape_cast %21 : vector<256x128xf32> to vector<1x256x128xf32>
      tpu.vector_store %arg6[%c0_17, %c0_18, %c0_19], %24 {strides = array<i32>} : memref<1x256x128xf32, #tpu.memory_space<vmem>>, vector<1x256x128xf32>,
    } else {
    }
    return
  }
  func.func @transform_0(%arg0: i32, %arg1: i32, %arg2: i32) -> (i32, i32, i32) {
    %c0_i32 = arith.constant 0 : i32
    return %arg0, %arg1, %arg2 : i32, i32, i32
  }
  func.func @transform_1(%arg0: i32, %arg1: i32, %arg2: i32) -> (i32, i32) {
    %c0_i32 = arith.constant 0 : i32
    %c0_i32_0 = arith.constant 0 : i32
    return %arg2, %c0_i32 : i32, i32
  }
  func.func @transform_2(%arg0: i32, %arg1: i32, %arg2: i32) -> (i32, i32) {
    %c0_i32 = arith.constant 0 : i32
    %c0_i32_0 = arith.constant 0 : i32
    %c0_i32_1 = arith.constant 0 : i32
    return %c0_i32, %c0_i32_0 : i32, i32
  }
  func.func @transform_3(%arg0: i32, %arg1: i32, %arg2: i32) -> (i32, i32, i32) {
    %c0_i32 = arith.constant 0 : i32
    %c0_i32_0 = arith.constant 0 : i32
    return %arg0, %arg1, %c0_i32 : i32, i32, i32
  }
}

</mosaic_0001>

<llo_original>
// kernel: tpu_custom_call.1
$region0: #{tpu_custom_call.1}
  #allocation0 [shape = 'u32[]', space=smem, size = 0x4, offset = 0x4, fixed_abs, tag = 'smem constant byte address 0x4 - core index']
  #allocation1 [shape = 'u32[144,128]{1,0:T(1,128)}', space=vmem, size = 0x12000, scoped, tag = 'internal scratch']
  #allocation2 [shape = 'f32[256,128]{1,0:T(8,128)}', space=vmem, size = 0x20000, scoped, tag = 'scratch operand']
  %s0 = inlined_call_operand.hbm [shape: bf16[2,1024,128], index: 0, kind: input, shape index: {}]
  %s1 = inlined_call_operand.hbm [shape: bf16[128,128], index: 1, kind: input, shape index: {}]
  %s2 = inlined_call_operand.vmem [shape: f32[1,128], index: 2, kind: input, shape index: {}]
  %s3 = inlined_call_operand.hbm [shape: f32[2,1024,128], index: 3, kind: output, shape index: {}]
  %s4 = sld [smem:[#allocation0]]
  $region61: #{tpu_custom_call.1} parent=0
    _
  %s6 = ssub.s32 1, %s4
  %s7 = scalar_select 0, %s6, %s4
  $region1: #{tpu_custom_call.1} parent=0
    #allocation3 [shape = 'u8[131072]{0}', space=vmem, size = 0x20000, scoped, tag = 'input window, operand 0']
    #allocation4 [shape = 's32[2]{0}', space=sflag, size = 0x8, scoped, tag = 'scoped memory for tpu_custom_call.1']
    #allocation5 [shape = 's32[2]{0}', space=sflag, size = 0x8, scoped, tag = 'scoped memory for tpu_custom_call.1']
    #allocation6 [shape = 'u8[32768]{0}', space=vmem, size = 0x8000, scoped, tag = 'input window, operand 1, single buffered']
    #allocation7 [shape = 's32[1]{0}', space=sflag, size = 0x4, scoped, tag = 'scoped memory for tpu_custom_call.1']
    #allocation8 [shape = 'u8[262144]{0}', space=vmem, size = 0x40000, scoped, tag = 'output window, operand 0']
    %8 = vsyncpa [#allocation4], 0
    %s9 = scalar_lea.sflag [#allocation4], 1
    %10 = vsyncpa %s9, 0
    %11 = vsyncpa [#allocation7], 0
    %12 = vsyncpa [#allocation5], 0
    %s13 = scalar_lea.sflag [#allocation5], 1
    %14 = vsyncpa %s13, 0
    loop: start=0, step=1, limit=10
    $region2: #{tpu_custom_call.1} parent=1 // loop_pre_header
      _
    $region3: #{tpu_custom_call.1} parent=1 // loop_header
      %s16 = sphi 0, %s20
      %p17 = scmp.ge.s32.totalorder %s16, 10
      %s23 = sphi 0, %s42
      %s24 = sphi 0, %s38
      %s25 = sphi 0, %s34
      %s26 = sphi 0, %s23
      %s27 = sphi 0, %s24
      %s28 = sphi 0, %s25
      %s29 = sphi 0, %s26
      %s30 = sphi 0, %s27
      %s31 = sphi 0, %s28
      %s49 = sphi 0, %s51
      %s52 = sphi 0, %s49
      %s53 = sphi 0, %s52
      %s69 = sphi 0, %s53
      %s75 = sphi 0, %s77
      %s78 = sphi 0, %s75
      %s79 = sphi 0, %s78
      %s95 = sphi 0, %s79
      %s99 = sphi 0, %s99
      %s101 = sphi 0, %s99
      %s102 = sphi 0, %s101
      %s116 = sphi 0, %s102
      %s124 = sphi 0, %s126
      %s127 = sphi 0, %s124
      %s128 = sphi 0, %s127
      %s144 = sphi 0, %s128
    $region4: #{tpu_custom_call.1} parent=1 // loop_header_branch
      %19 = sbr.rel (%p17) target = $region8
    $region5: #{tpu_custom_call.1} parent=1 // loop_body
      %s21 = ssub.s32 %s16, 1
      %s22 = ssub.s32 %s16, 2
      %s32 = sadd.s32 1, %s25
      %p33 = scmp.ge.s32.totalorder %s32, 1
      %s34 = scalar_select %p33, 0, %s32
      %s35 = sadd.s32 1, %s24
      %s36 = scalar_select %p33, %s35, %s24
      %p37 = scmp.ge.s32.totalorder %s36, 4
      %s38 = scalar_select %p37, 0, %s36
      %s39 = sadd.s32 1, %s23
      %s40 = scalar_select %p37, %s39, %s23
      %p41 = scmp.ge.s32.totalorder %s40, 2
      %s42 = scalar_select %p41, 0, %s40
      %s43 = ssub.s32 %s23, %s42
      %s44 = ssub.s32 %s24, %s38
      %s45 = sor.u32 %s43, %s44
      %s46 = ssub.s32 %s25, %s34
      %s47 = sor.u32 %s45, %s46
      %p48 = scmp.eq.s32.totalorder %s47, 0
      %s50 = sadd.s32 %s49, 1
      %s51 = scalar_select %p48, %s49, %s50
      %p54 = pneg %p48
      %p55 = scmp.eq.s32.totalorder %s16, 7
      %p56 = por %p54, %p55
      %p57 = scmp.ne.s32.totalorder %s49, %s52
      %p58 = scmp.eq.s32.totalorder %s16, 0
      %p59 = por %p57, %p58
      %p60 = scmp.ne.s32.totalorder %s49, %s52
      %p61 = scmp.eq.s32.totalorder %s21, 7
      %p62 = por %p60, %p61
      %p63 = scmp.ne.s32.totalorder %s52, %s53
      %p64 = scmp.eq.s32.totalorder %s21, 0
      %p65 = por %p63, %p64
      %p66 = scmp.ne.s32.totalorder %s52, %s53
      %p67 = scmp.eq.s32.totalorder %s22, 7
      %p68 = por %p66, %p67
      %p70 = scmp.ne.s32.totalorder %s53, %s69
      %p71 = scmp.eq.s32.totalorder %s22, 0
      %p72 = por %p70, %p71
      %s73 = ssub.s32 %s25, %s34
      %p74 = scmp.eq.s32.totalorder %s73, 0
      %s76 = sadd.s32 %s75, 1
      %s77 = scalar_select %p74, %s75, %s76
      %p80 = pneg %p74
      %p81 = scmp.eq.s32.totalorder %s16, 7
      %p82 = por %p80, %p81
      %p83 = scmp.ne.s32.totalorder %s75, %s78
      %p84 = scmp.eq.s32.totalorder %s16, 0
      %p85 = por %p83, %p84
      %p86 = scmp.ne.s32.totalorder %s75, %s78
      %p87 = scmp.eq.s32.totalorder %s21, 7
      %p88 = por %p86, %p87
      %p89 = scmp.ne.s32.totalorder %s78, %s79
      %p90 = scmp.eq.s32.totalorder %s21, 0
      %p91 = por %p89, %p90
      %p92 = scmp.ne.s32.totalorder %s78, %s79
      %p93 = scmp.eq.s32.totalorder %s22, 7
      %p94 = por %p92, %p93
      %p96 = scmp.ne.s32.totalorder %s79, %s95
      %p97 = scmp.eq.s32.totalorder %s22, 0
      %p98 = por %p96, %p97
      %s100 = sadd.s32 %s99, 1
      %p103 = scmp.eq.s32.totalorder %s16, 7
      %p104 = scmp.ne.s32.totalorder %s99, %s101
      %p105 = scmp.eq.s32.totalorder %s16, 0
      %p106 = por %p104, %p105
      %p107 = scmp.ne.s32.totalorder %s99, %s101
      %p108 = scmp.eq.s32.totalorder %s21, 7
      %p109 = por %p107, %p108
      %p110 = scmp.ne.s32.totalorder %s101, %s102
      %p111 = scmp.eq.s32.totalorder %s21, 0
      %p112 = por %p110, %p111
      %p113 = scmp.ne.s32.totalorder %s101, %s102
      %p114 = scmp.eq.s32.totalorder %s22, 7
      %p115 = por %p113, %p114
      %p117 = scmp.ne.s32.totalorder %s102, %s116
      %p118 = scmp.eq.s32.totalorder %s22, 0
      %p119 = por %p117, %p118
      %s120 = ssub.s32 %s23, %s42
      %s121 = ssub.s32 %s24, %s38
      %s122 = sor.u32 %s120, %s121
      %p123 = scmp.eq.s32.totalorder %s122, 0
      %s125 = sadd.s32 %s124, 1
      %s126 = scalar_select %p123, %s124, %s125
      %p129 = pneg %p123
      %p130 = scmp.eq.s32.totalorder %s16, 7
      %p131 = por %p129, %p130
      %p132 = scmp.ne.s32.totalorder %s124, %s127
      %p133 = scmp.eq.s32.totalorder %s16, 0
      %p134 = por %p132, %p133
      %p135 = scmp.ne.s32.totalorder %s124, %s127
      %p136 = scmp.eq.s32.totalorder %s21, 7
      %p137 = por %p135, %p136
      %p138 = scmp.ne.s32.totalorder %s127, %s128
      %p139 = scmp.eq.s32.totalorder %s21, 0
      %p140 = por %p138, %p139
      %p141 = scmp.ne.s32.totalorder %s127, %s128
      %p142 = scmp.eq.s32.totalorder %s22, 7
      %p143 = por %p141, %p142
      %p145 = scmp.ne.s32.totalorder %s128, %s144
      %p146 = scmp.eq.s32.totalorder %s22, 0
      %p147 = por %p145, %p146
      %p148 = scmp.le.s32.totalorder 1, %s16
      %p149 = scmp.lt.s32.totalorder %s16, 9
      %p150 = pnand %p148, %p149
      %p151 = pneg %p150
      // Predicated region
      $region9: #{tpu_custom_call.1} parent=5 // pred_check
        _
      $region10: #{tpu_custom_call.1} parent=5 // pred_check_branch
        %153 = sbr.rel (%p150) target = $region12
      $region11: #{tpu_custom_call.1} parent=5 // pred_region
        %s154 = ssub.s32 %s16, 1
        // Predicated region
        $region13: #{tpu_custom_call.1} parent=11 // pred_check
          %p155 = pneg %p91
        $region14: #{tpu_custom_call.1} parent=11 // pred_check_branch
          %157 = sbr.rel (%p155) target = $region16
        $region15: #{tpu_custom_call.1} parent=11 // pred_region
          %s158 = smul.u32 16, %s28
          %s160 = ssub.s32 1024, 1024
          %161 = vsyncadd [#allocation7], %s160
          %s162 = smul.addr %s158, 64
          %s163 = scalar_lea.hbm %s1, %s162
          %s164 = sshll.u32 [#allocation6], 4
          %s165 = int_to_ptr.vmem [resolvable:$true] %s164
          %170 = dma.hbm_to_vmem [thread:$0]  %s163, 1024, %s165, [#allocation7], 64, 64, 4
        $region16: #{tpu_custom_call.1} parent=11 // pred_fallthru
          _
        // Predicated region
        $region17: #{tpu_custom_call.1} parent=11 // pred_check
          %p171 = pneg %p112
        $region18: #{tpu_custom_call.1} parent=11 // pred_check_branch
          %173 = sbr.rel (%p171) target = $region20
        $region19: #{tpu_custom_call.1} parent=11 // pred_region
          _
        $region20: #{tpu_custom_call.1} parent=11 // pred_fallthru
          _
      $region12: #{tpu_custom_call.1} parent=5 // pred_fallthru
        _
      %p174 = scmp.lt.s32.totalorder %s16, 8
      // Predicated region
      $region21: #{tpu_custom_call.1} parent=5 // pred_check
        %p175 = pneg %p174
      $region22: #{tpu_custom_call.1} parent=5 // pred_check_branch
        %177 = sbr.rel (%p175) target = $region24
      $region23: #{tpu_custom_call.1} parent=5 // pred_region
        // Predicated region
        $region25: #{tpu_custom_call.1} parent=23 // pred_check
          %p178 = pneg %p59
        $region26: #{tpu_custom_call.1} parent=23 // pred_check_branch
          %180 = sbr.rel (%p178) target = $region28
        $region27: #{tpu_custom_call.1} parent=23 // pred_region
          %s181 = sand.u32 %s49, 1
          %s182 = scalar_lea.sflag [#allocation4], %s181
          %s183 = sand.u32 %s49, 1
          %s184 = smul.addr %s183, 128
          %s185 = scalar_lea.vmem [#allocation3], %s184
          %s186 = smul.u32 32, %s24
          %s188 = ssub.s32 2048, 2048
          %189 = vsyncadd %s182, %s188
          %s190 = sadd.s32 %s25, %s186
          %s191 = smul.addr %s23, 128
          %s192 = sadd.s32 %s190, %s191
          %s193 = smul.addr %s192, 64
          %s194 = scalar_lea.hbm %s0, %s193
          %s195 = sshll.u32 %s185, 4
          %s196 = int_to_ptr.vmem [resolvable:$true] %s195
          %201 = dma.hbm_to_vmem [thread:$0]  %s194, 2048, %s196, %s182, 64, 64, 4
        $region28: #{tpu_custom_call.1} parent=23 // pred_fallthru
          _
      $region24: #{tpu_custom_call.1} parent=5 // pred_fallthru
        _
      %p202 = scmp.le.s32.totalorder 1, %s16
      %p203 = scmp.lt.s32.totalorder %s16, 9
      %p204 = pnand %p202, %p203
      %p205 = pneg %p204
      // Predicated region
      $region29: #{tpu_custom_call.1} parent=5 // pred_check
        _
      $region30: #{tpu_custom_call.1} parent=5 // pred_check_branch
        %207 = sbr.rel (%p204) target = $region32
      $region31: #{tpu_custom_call.1} parent=5 // pred_region
        %s208 = ssub.s32 %s16, 1
        %s209 = sand.u32 %s52, 1
        %s210 = scalar_lea.sflag [#allocation4], %s209
        %s211 = sand.u32 %s52, 1
        %s212 = smul.addr %s211, 128
        %s213 = scalar_lea.vmem [#allocation3], %s212
        // Predicated region
        $region33: #{tpu_custom_call.1} parent=31 // pred_check
          %p214 = pneg %p65
        $region34: #{tpu_custom_call.1} parent=31 // pred_check_branch
          %216 = sbr.rel (%p214) target = $region36
        $region35: #{tpu_custom_call.1} parent=31 // pred_region
          %217 = dma.done %s210, 2048
        $region36: #{tpu_custom_call.1} parent=31 // pred_fallthru
          _
        // Predicated region
        $region37: #{tpu_custom_call.1} parent=31 // pred_check
          %p218 = pneg %p91
        $region38: #{tpu_custom_call.1} parent=31 // pred_check_branch
          %220 = sbr.rel (%p218) target = $region40
        $region39: #{tpu_custom_call.1} parent=31 // pred_region
          %221 = dma.done [#allocation7], 1024
        $region40: #{tpu_custom_call.1} parent=31 // pred_fallthru
          _
        %s222 = sand.u32 %s52, 1
        %s223 = scalar_lea.sflag [#allocation4], %s222
        %s224 = sand.u32 %s52, 1
        %s225 = smul.addr %s224, 128
        %s226 = scalar_lea.vmem [#allocation3], %s225
        %p227 = pneg %p65
        %p228 = pneg %p62
        %p229 = pneg %p91
        %p230 = pneg %p88
        %p231 = pneg %p112
        %p232 = pneg %p109
        %p233 = pneg %p140
        %p234 = pneg %p137
        %s235 = sand.u32 %s127, 1
        %s236 = scalar_lea.sflag [#allocation5], %s235
        %s237 = sand.u32 %s127, 1
        %s238 = smul.addr %s237, 256
        %s239 = scalar_lea.vmem [#allocation8], %s238
        %s240 = smul.u32 32, %s27
        %s241 = smul.u32 16, %s28
        %s242 = smul.u32 32, %s27
        %p244 = scmp.eq.s32.totalorder %s28, 0
        // Predicated region
        $region41: #{tpu_custom_call.1} parent=31 // pred_check
          %p245 = pneg %p244
        $region42: #{tpu_custom_call.1} parent=31 // pred_check_branch
          %247 = sbr.rel (%p245) target = $region44
        $region43: #{tpu_custom_call.1} parent=31 // pred_region
          %248 = vst [vmem:[#allocation2] sm:$0xff] 0.0
          %249 = vst [vmem:[#allocation2 + $0x8] sm:$0xff] 0.0
          %250 = vst [vmem:[#allocation2 + $0x10] sm:$0xff] 0.0
          %251 = vst [vmem:[#allocation2 + $0x18] sm:$0xff] 0.0
          %252 = vst [vmem:[#allocation2 + $0x20] sm:$0xff] 0.0
          %253 = vst [vmem:[#allocation2 + $0x28] sm:$0xff] 0.0
          %254 = vst [vmem:[#allocation2 + $0x30] sm:$0xff] 0.0
          %255 = vst [vmem:[#allocation2 + $0x38] sm:$0xff] 0.0
          %256 = vst [vmem:[#allocation2 + $0x40] sm:$0xff] 0.0
          %257 = vst [vmem:[#allocation2 + $0x48] sm:$0xff] 0.0
          %258 = vst [vmem:[#allocation2 + $0x50] sm:$0xff] 0.0
          %259 = vst [vmem:[#allocation2 + $0x58] sm:$0xff] 0.0
          %260 = vst [vmem:[#allocation2 + $0x60] sm:$0xff] 0.0
          %261 = vst [vmem:[#allocation2 + $0x68] sm:$0xff] 0.0
          %262 = vst [vmem:[#allocation2 + $0x70] sm:$0xff] 0.0
          %263 = vst [vmem:[#allocation2 + $0x78] sm:$0xff] 0.0
          %264 = vst [vmem:[#allocation2 + $0x80] sm:$0xff] 0.0
          %265 = vst [vmem:[#allocation2 + $0x88] sm:$0xff] 0.0
          %266 = vst [vmem:[#allocation2 + $0x90] sm:$0xff] 0.0
          %267 = vst [vmem:[#allocation2 + $0x98] sm:$0xff] 0.0
          %268 = vst [vmem:[#allocation2 + $0xa0] sm:$0xff] 0.0
          %269 = vst [vmem:[#allocation2 + $0xa8] sm:$0xff] 0.0
          %270 = vst [vmem:[#allocation2 + $0xb0] sm:$0xff] 0.0
          %271 = vst [vmem:[#allocation2 + $0xb8] sm:$0xff] 0.0
          %272 = vst [vmem:[#allocation2 + $0xc0] sm:$0xff] 0.0
          %273 = vst [vmem:[#allocation2 + $0xc8] sm:$0xff] 0.0
          %274 = vst [vmem:[#allocation2 + $0xd0] sm:$0xff] 0.0
          %275 = vst [vmem:[#allocation2 + $0xd8] sm:$0xff] 0.0
          %276 = vst [vmem:[#allocation2 + $0xe0] sm:$0xff] 0.0
          %277 = vst [vmem:[#allocation2 + $0xe8] sm:$0xff] 0.0
          %278 = vst [vmem:[#allocation2 + $0xf0] sm:$0xff] 0.0
          %279 = vst [vmem:[#allocation2 + $0xf8] sm:$0xff] 0.0
        $region44: #{tpu_custom_call.1} parent=31 // pred_fallthru
          _
        %v280 = vld [vmem:[#allocation2] sm:$0xff]
        %v281 = vld [vmem:[#allocation2 + $0x8] sm:$0xff]
        %v282 = vld [vmem:[#allocation2 + $0x10] sm:$0xff]
        %v283 = vld [vmem:[#allocation2 + $0x18] sm:$0xff]
        %v284 = vld [vmem:[#allocation2 + $0x20] sm:$0xff]
        %v285 = vld [vmem:[#allocation2 + $0x28] sm:$0xff]
        %v286 = vld [vmem:[#allocation2 + $0x30] sm:$0xff]
        %v287 = vld [vmem:[#allocation2 + $0x38] sm:$0xff]
        %v288 = vld [vmem:[#allocation2 + $0x40] sm:$0xff]
        %v289 = vld [vmem:[#allocation2 + $0x48] sm:$0xff]
        %v290 = vld [vmem:[#allocation2 + $0x50] sm:$0xff]
        %v291 = vld [vmem:[#allocation2 + $0x58] sm:$0xff]
        %v292 = vld [vmem:[#allocation2 + $0x60] sm:$0xff]
        %v293 = vld [vmem:[#allocation2 + $0x68] sm:$0xff]
        %v294 = vld [vmem:[#allocation2 + $0x70] sm:$0xff]
        %v295 = vld [vmem:[#allocation2 + $0x78] sm:$0xff]
        %v296 = vld [vmem:[#allocation2 + $0x80] sm:$0xff]
        %v297 = vld [vmem:[#allocation2 + $0x88] sm:$0xff]
        %v298 = vld [vmem:[#allocation2 + $0x90] sm:$0xff]
        %v299 = vld [vmem:[#allocation2 + $0x98] sm:$0xff]
        %v300 = vld [vmem:[#allocation2 + $0xa0] sm:$0xff]
        %v301 = vld [vmem:[#allocation2 + $0xa8] sm:$0xff]
        %v302 = vld [vmem:[#allocation2 + $0xb0] sm:$0xff]
        %v303 = vld [vmem:[#allocation2 + $0xb8] sm:$0xff]
        %v304 = vld [vmem:[#allocation2 + $0xc0] sm:$0xff]
        %v305 = vld [vmem:[#allocation2 + $0xc8] sm:$0xff]
        %v306 = vld [vmem:[#allocation2 + $0xd0] sm:$0xff]
        %v307 = vld [vmem:[#allocation2 + $0xd8] sm:$0xff]
        %v308 = vld [vmem:[#allocation2 + $0xe0] sm:$0xff]
        %v309 = vld [vmem:[#allocation2 + $0xe8] sm:$0xff]
        %v310 = vld [vmem:[#allocation2 + $0xf0] sm:$0xff]
        %v311 = vld [vmem:[#allocation2 + $0xf8] sm:$0xff]
        %v312 = vld [vmem:[%s213] sm:$0xf]
        %v313 = vld [vmem:[%s213 + $0x4] sm:$0xf]
        %v314 = vld [vmem:[%s213 + $0x8] sm:$0xf]
        %v315 = vld [vmem:[%s213 + $0xc] sm:$0xf]
        %v316 = vld [vmem:[%s213 + $0x10] sm:$0xf]
        %v317 = vld [vmem:[%s213 + $0x14] sm:$0xf]
        %v318 = vld [vmem:[%s213 + $0x18] sm:$0xf]
        %v319 = vld [vmem:[%s213 + $0x1c] sm:$0xf]
        %v320 = vld [vmem:[%s213 + $0x20] sm:$0xf]
        %v321 = vld [vmem:[%s213 + $0x24] sm:$0xf]
        %v322 = vld [vmem:[%s213 + $0x28] sm:$0xf]
        %v323 = vld [vmem:[%s213 + $0x2c] sm:$0xf]
        %v324 = vld [vmem:[%s213 + $0x30] sm:$0xf]
        %v325 = vld [vmem:[%s213 + $0x34] sm:$0xf]
        %v326 = vld [vmem:[%s213 + $0x38] sm:$0xf]
        %v327 = vld [vmem:[%s213 + $0x3c] sm:$0xf]
        %v328 = vld [vmem:[%s213 + $0x40] sm:$0xf]
        %v329 = vld [vmem:[%s213 + $0x44] sm:$0xf]
        %v330 = vld [vmem:[%s213 + $0x48] sm:$0xf]
        %v331 = vld [vmem:[%s213 + $0x4c] sm:$0xf]
        %v332 = vld [vmem:[%s213 + $0x50] sm:$0xf]
        %v333 = vld [vmem:[%s213 + $0x54] sm:$0xf]
        %v334 = vld [vmem:[%s213 + $0x58] sm:$0xf]
        %v335 = vld [vmem:[%s213 + $0x5c] sm:$0xf]
        %v336 = vld [vmem:[%s213 + $0x60] sm:$0xf]
        %v337 = vld [vmem:[%s213 + $0x64] sm:$0xf]
        %v338 = vld [vmem:[%s213 + $0x68] sm:$0xf]
        %v339 = vld [vmem:[%s213 + $0x6c] sm:$0xf]
        %v340 = vld [vmem:[%s213 + $0x70] sm:$0xf]
        %v341 = vld [vmem:[%s213 + $0x74] sm:$0xf]
        %v342 = vld [vmem:[%s213 + $0x78] sm:$0xf]
        %v343 = vld [vmem:[%s213 + $0x7c] sm:$0xf]
        %v344 = vld [vmem:[#allocation6] sm:$0xf]
        %v345 = vld [vmem:[#allocation6 + $0x4] sm:$0xf]
        %v346 = vld [vmem:[#allocation6 + $0x8] sm:$0xf]
        %v347 = vld [vmem:[#allocation6 + $0xc] sm:$0xf]
        %v348 = vld [vmem:[#allocation6 + $0x10] sm:$0xf]
        %v349 = vld [vmem:[#allocation6 + $0x14] sm:$0xf]
        %v350 = vld [vmem:[#allocation6 + $0x18] sm:$0xf]
        %v351 = vld [vmem:[#allocation6 + $0x1c] sm:$0xf]
        %v352 = vld [vmem:[#allocation6 + $0x20] sm:$0xf]
        %v353 = vld [vmem:[#allocation6 + $0x24] sm:$0xf]
        %v354 = vld [vmem:[#allocation6 + $0x28] sm:$0xf]
        %v355 = vld [vmem:[#allocation6 + $0x2c] sm:$0xf]
        %v356 = vld [vmem:[#allocation6 + $0x30] sm:$0xf]
        %v357 = vld [vmem:[#allocation6 + $0x34] sm:$0xf]
        %v358 = vld [vmem:[#allocation6 + $0x38] sm:$0xf]
        %v359 = vld [vmem:[#allocation6 + $0x3c] sm:$0xf]
        %v392 = vunpack.c.l.b16 %v312
        %v393 = vunpack.c.l.b16 %v313
        %v394 = vunpack.c.l.b16 %v314
        %v395 = vunpack.c.l.b16 %v315
        %v396 = vunpack.c.l.b16 %v316
        %v397 = vunpack.c.l.b16 %v317
        %v398 = vunpack.c.l.b16 %v318
        %v399 = vunpack.c.l.b16 %v319
        %v400 = vunpack.c.l.b16 %v320
        %v401 = vunpack.c.l.b16 %v321
        %v402 = vunpack.c.l.b16 %v322
        %v403 = vunpack.c.l.b16 %v323
        %v404 = vunpack.c.l.b16 %v324
        %v405 = vunpack.c.l.b16 %v325
        %v406 = vunpack.c.l.b16 %v326
        %v407 = vunpack.c.l.b16 %v327
        %v408 = vunpack.c.l.b16 %v328
        %v409 = vunpack.c.l.b16 %v329
        %v410 = vunpack.c.l.b16 %v330
        %v411 = vunpack.c.l.b16 %v331
        %v412 = vunpack.c.l.b16 %v332
        %v413 = vunpack.c.l.b16 %v333
        %v414 = vunpack.c.l.b16 %v334
        %v415 = vunpack.c.l.b16 %v335
        %v416 = vunpack.c.l.b16 %v336
        %v417 = vunpack.c.l.b16 %v337
        %v418 = vunpack.c.l.b16 %v338
        %v419 = vunpack.c.l.b16 %v339
        %v420 = vunpack.c.l.b16 %v340
        %v421 = vunpack.c.l.b16 %v341
        %v422 = vunpack.c.l.b16 %v342
        %v423 = vunpack.c.l.b16 %v343
        %v424 = vpack.c.b16 %v393, %v392
        %v425 = vpack.c.b16 %v395, %v394
        %v426 = vpack.c.b16 %v397, %v396
        %v427 = vpack.c.b16 %v399, %v398
        %v428 = vpack.c.b16 %v401, %v400
        %v429 = vpack.c.b16 %v403, %v402
        %v430 = vpack.c.b16 %v405, %v404
        %v431 = vpack.c.b16 %v407, %v406
        %v432 = vpack.c.b16 %v409, %v408
        %v433 = vpack.c.b16 %v411, %v410
        %v434 = vpack.c.b16 %v413, %v412
        %v435 = vpack.c.b16 %v415, %v414
        %v436 = vpack.c.b16 %v417, %v416
        %v437 = vpack.c.b16 %v419, %v418
        %v438 = vpack.c.b16 %v421, %v420
        %v439 = vpack.c.b16 %v423, %v422
        %v472 = vunpack.c.l.b16 %v344
        %v473 = vunpack.c.l.b16 %v345
        %v474 = vunpack.c.l.b16 %v346
        %v475 = vunpack.c.l.b16 %v347
        %v476 = vunpack.c.l.b16 %v348
        %v477 = vunpack.c.l.b16 %v349
        %v478 = vunpack.c.l.b16 %v350
        %v479 = vunpack.c.l.b16 %v351
        %v480 = vunpack.c.l.b16 %v352
        %v481 = vunpack.c.l.b16 %v353
        %v482 = vunpack.c.l.b16 %v354
        %v483 = vunpack.c.l.b16 %v355
        %v484 = vunpack.c.l.b16 %v356
        %v485 = vunpack.c.l.b16 %v357
        %v486 = vunpack.c.l.b16 %v358
        %v487 = vunpack.c.l.b16 %v359
        %v488 = vpack.c.b16 %v473, %v472
        %v489 = vpack.c.b16 %v475, %v474
        %v490 = vpack.c.b16 %v477, %v476
        %v491 = vpack.c.b16 %v479, %v478
        %v492 = vpack.c.b16 %v481, %v480
        %v493 = vpack.c.b16 %v483, %v482
        %v494 = vpack.c.b16 %v485, %v484
        %v495 = vpack.c.b16 %v487, %v486
        %504 = vmatprep.subr.bf16.mxu0 0
        %505 = vmatpush1.bf16.msra.mxu0 %v488
        %506 = vmatprep.subr.bf16.mxu0 0
        %507 = vmatpush1.bf16.msra.mxu0 %v489
        %508 = vmatprep.subr.bf16.mxu0 0
        %509 = vmatpush1.bf16.msra.mxu0 %v490
        %510 = vmatprep.subr.bf16.mxu0 0
        %511 = vmatpush1.bf16.msra.mxu0 %v491
        %512 = vmatprep.subr.bf16.mxu0 0
        %513 = vmatpush1.bf16.msra.mxu0 %v492
        %514 = vmatprep.subr.bf16.mxu0 0
        %515 = vmatpush1.bf16.msra.mxu0 %v493
        %516 = vmatprep.subr.bf16.mxu0 0
        %517 = vmatpush1.bf16.msra.mxu0 %v494
        %518 = vmatprep.subr.bf16.mxu0 0
        %519 = vmatpush1.bf16.msra.mxu0 %v495
        %520 = vmatprep.subr.bf16.mxu0 0
        %521 = vmatpush1.bf16.msra.mxu0 0
        %522 = vmatprep.subr.bf16.mxu0 0
        %523 = vmatpush1.bf16.msra.mxu0 0
        %524 = vmatprep.subr.bf16.mxu0 0
        %525 = vmatpush1.bf16.msra.mxu0 0
        %526 = vmatprep.subr.bf16.mxu0 0
        %527 = vmatpush1.bf16.msra.mxu0 0
        %528 = vmatprep.subr.bf16.mxu0 0
        %529 = vmatpush1.bf16.msra.mxu0 0
        %530 = vmatprep.subr.bf16.mxu0 0
        %531 = vmatpush1.bf16.msra.mxu0 0
        %532 = vmatprep.subr.bf16.mxu0 0
        %533 = vmatpush1.bf16.msra.mxu0 0
        %534 = vmatprep.subr.bf16.mxu0 0
        %535 = vmatpush1.bf16.msra.mxu0 0
        %536 = vmatprep.mubr.bf16.mxu0 0
        %537 = vmatmul.mubr.bf16.gmra.mrb[0].mxu0 %v424
        %v538 = vpop.f32.mrb[0].mxu0
        %v539 = vadd.f32 0.0, %v538
        %v540 = vpop.f32.mrb[0].mxu0
        %v541 = vpop.f32.mrb[0].mxu0
        %v542 = vadd.f32 0.0, %v541
        %v543 = vpop.f32.mrb[0].mxu0
        %544 = vmatprep.mubr.bf16.mxu0 0
        %545 = vmatmul.mubr.bf16.gmra.mrb[0].mxu0 %v425
        %v546 = vpop.f32.mrb[0].mxu0
        %v547 = vadd.f32 0.0, %v546
        %v548 = vpop.f32.mrb[0].mxu0
        %v549 = vpop.f32.mrb[0].mxu0
        %v550 = vadd.f32 0.0, %v549
        %v551 = vpop.f32.mrb[0].mxu0
        %552 = vmatprep.mubr.bf16.mxu0 0
        %553 = vmatmul.mubr.bf16.gmra.mrb[0].mxu0 %v426
        %v554 = vpop.f32.mrb[0].mxu0
        %v555 = vadd.f32 0.0, %v554
        %v556 = vpop.f32.mrb[0].mxu0
        %v557 = vpop.f32.mrb[0].mxu0
        %v558 = vadd.f32 0.0, %v557
        %v559 = vpop.f32.mrb[0].mxu0
        %560 = vmatprep.mubr.bf16.mxu0 0
        %561 = vmatmul.mubr.bf16.gmra.mrb[0].mxu0 %v427
        %v562 = vpop.f32.mrb[0].mxu0
        %v563 = vadd.f32 0.0, %v562
        %v564 = vpop.f32.mrb[0].mxu0
        %v565 = vpop.f32.mrb[0].mxu0
        %v566 = vadd.f32 0.0, %v565
        %v567 = vpop.f32.mrb[0].mxu0
        %568 = vmatprep.mubr.bf16.mxu0 0
        %569 = vmatmul.mubr.bf16.gmra.mrb[0].mxu0 %v428
        %v570 = vpop.f32.mrb[0].mxu0
        %v571 = vadd.f32 0.0, %v570
        %v572 = vpop.f32.mrb[0].mxu0
        %v573 = vpop.f32.mrb[0].mxu0
        %v574 = vadd.f32 0.0, %v573
        %v575 = vpop.f32.mrb[0].mxu0
        %576 = vmatprep.mubr.bf16.mxu0 0
        %577 = vmatmul.mubr.bf16.gmra.mrb[0].mxu0 %v429
        %v578 = vpop.f32.mrb[0].mxu0
        %v579 = vadd.f32 0.0, %v578
        %v580 = vpop.f32.mrb[0].mxu0
        %v581 = vpop.f32.mrb[0].mxu0
        %v582 = vadd.f32 0.0, %v581
        %v583 = vpop.f32.mrb[0].mxu0
        %584 = vmatprep.mubr.bf16.mxu0 0
        %585 = vmatmul.mubr.bf16.gmra.mrb[0].mxu0 %v430
        %v586 = vpop.f32.mrb[0].mxu0
        %v587 = vadd.f32 0.0, %v586
        %v588 = vpop.f32.mrb[0].mxu0
        %v589 = vpop.f32.mrb[0].mxu0
        %v590 = vadd.f32 0.0, %v589
        %v591 = vpop.f32.mrb[0].mxu0
        %592 = vmatprep.mubr.bf16.mxu0 0
        %593 = vmatmul.mubr.bf16.gmra.mrb[0].mxu0 %v431
        %v594 = vpop.f32.mrb[0].mxu0
        %v595 = vadd.f32 0.0, %v594
        %v596 = vpop.f32.mrb[0].mxu0
        %v597 = vpop.f32.mrb[0].mxu0
        %v598 = vadd.f32 0.0, %v597
        %v599 = vpop.f32.mrb[0].mxu0
        %600 = vmatprep.mubr.bf16.mxu0 0
        %601 = vmatmul.mubr.bf16.gmra.mrb[0].mxu0 %v432
        %v602 = vpop.f32.mrb[0].mxu0
        %v603 = vadd.f32 0.0, %v602
        %v604 = vpop.f32.mrb[0].mxu0
        %v605 = vpop.f32.mrb[0].mxu0
        %v606 = vadd.f32 0.0, %v605
        %v607 = vpop.f32.mrb[0].mxu0
        %608 = vmatprep.mubr.bf16.mxu0 0
        %609 = vmatmul.mubr.bf16.gmra.mrb[0].mxu0 %v433
        %v610 = vpop.f32.mrb[0].mxu0
        %v611 = vadd.f32 0.0, %v610
        %v612 = vpop.f32.mrb[0].mxu0
        %v613 = vpop.f32.mrb[0].mxu0
        %v614 = vadd.f32 0.0, %v613
        %v615 = vpop.f32.mrb[0].mxu0
        %616 = vmatprep.mubr.bf16.mxu0 0
        %617 = vmatmul.mubr.bf16.gmra.mrb[0].mxu0 %v434
        %v618 = vpop.f32.mrb[0].mxu0
        %v619 = vadd.f32 0.0, %v618
        %v620 = vpop.f32.mrb[0].mxu0
        %v621 = vpop.f32.mrb[0].mxu0
        %v622 = vadd.f32 0.0, %v621
        %v623 = vpop.f32.mrb[0].mxu0
        %624 = vmatprep.mubr.bf16.mxu0 0
        %625 = vmatmul.mubr.bf16.gmra.mrb[0].mxu0 %v435
        %v626 = vpop.f32.mrb[0].mxu0
        %v627 = vadd.f32 0.0, %v626
        %v628 = vpop.f32.mrb[0].mxu0
        %v629 = vpop.f32.mrb[0].mxu0
        %v630 = vadd.f32 0.0, %v629
        %v631 = vpop.f32.mrb[0].mxu0
        %632 = vmatprep.mubr.bf16.mxu0 0
        %633 = vmatmul.mubr.bf16.gmra.mrb[0].mxu0 %v436
        %v634 = vpop.f32.mrb[0].mxu0
        %v635 = vadd.f32 0.0, %v634
        %v636 = vpop.f32.mrb[0].mxu0
        %v637 = vpop.f32.mrb[0].mxu0
        %v638 = vadd.f32 0.0, %v637
        %v639 = vpop.f32.mrb[0].mxu0
        %640 = vmatprep.mubr.bf16.mxu0 0
        %641 = vmatmul.mubr.bf16.gmra.mrb[0].mxu0 %v437
        %v642 = vpop.f32.mrb[0].mxu0
        %v643 = vadd.f32 0.0, %v642
        %v644 = vpop.f32.mrb[0].mxu0
        %v645 = vpop.f32.mrb[0].mxu0
        %v646 = vadd.f32 0.0, %v645
        %v647 = vpop.f32.mrb[0].mxu0
        %648 = vmatprep.mubr.bf16.mxu0 0
        %649 = vmatmul.mubr.bf16.gmra.mrb[0].mxu0 %v438
        %v650 = vpop.f32.mrb[0].mxu0
        %v651 = vadd.f32 0.0, %v650
        %v652 = vpop.f32.mrb[0].mxu0
        %v653 = vpop.f32.mrb[0].mxu0
        %v654 = vadd.f32 0.0, %v653
        %v655 = vpop.f32.mrb[0].mxu0
        %656 = vmatprep.mubr.bf16.mxu0 0
        %657 = vmatmul.mubr.bf16.gmra.mrb[0].mxu0 %v439
        %v658 = vpop.f32.mrb[0].mxu0
        %v659 = vadd.f32 0.0, %v658
        %v660 = vpop.f32.mrb[0].mxu0
        %v661 = vpop.f32.mrb[0].mxu0
        %v662 = vadd.f32 0.0, %v661
        %v663 = vpop.f32.mrb[0].mxu0
        %664 = vdwg.mxu0
        %v665 = vadd.f32 %v280, %v539
        %v666 = vadd.f32 %v281, %v542
        %v667 = vadd.f32 %v282, %v547
        %v668 = vadd.f32 %v283, %v550
        %v669 = vadd.f32 %v284, %v555
        %v670 = vadd.f32 %v285, %v558
        %v671 = vadd.f32 %v286, %v563
        %v672 = vadd.f32 %v287, %v566
        %v673 = vadd.f32 %v288, %v571
        %v674 = vadd.f32 %v289, %v574
        %v675 = vadd.f32 %v290, %v579
        %v676 = vadd.f32 %v291, %v582
        %v677 = vadd.f32 %v292, %v587
        %v678 = vadd.f32 %v293, %v590
        %v679 = vadd.f32 %v294, %v595
        %v680 = vadd.f32 %v295, %v598
        %v681 = vadd.f32 %v296, %v603
        %v682 = vadd.f32 %v297, %v606
        %v683 = vadd.f32 %v298, %v611
        %v684 = vadd.f32 %v299, %v614
        %v685 = vadd.f32 %v300, %v619
        %v686 = vadd.f32 %v301, %v622
        %v687 = vadd.f32 %v302, %v627
        %v688 = vadd.f32 %v303, %v630
        %v689 = vadd.f32 %v304, %v635
        %v690 = vadd.f32 %v305, %v638
        %v691 = vadd.f32 %v306, %v643
        %v692 = vadd.f32 %v307, %v646
        %v693 = vadd.f32 %v308, %v651
        %v694 = vadd.f32 %v309, %v654
        %v695 = vadd.f32 %v310, %v659
        %v696 = vadd.f32 %v311, %v662
        %697 = vst [vmem:[#allocation2] sm:$0xff] %v665
        %698 = vst [vmem:[#allocation2 + $0x8] sm:$0xff] %v666
        %699 = vst [vmem:[#allocation2 + $0x10] sm:$0xff] %v667
        %700 = vst [vmem:[#allocation2 + $0x18] sm:$0xff] %v668
        %701 = vst [vmem:[#allocation2 + $0x20] sm:$0xff] %v669
        %702 = vst [vmem:[#allocation2 + $0x28] sm:$0xff] %v670
        %703 = vst [vmem:[#allocation2 + $0x30] sm:$0xff] %v671
        %704 = vst [vmem:[#allocation2 + $0x38] sm:$0xff] %v672
        %705 = vst [vmem:[#allocation2 + $0x40] sm:$0xff] %v673
        %706 = vst [vmem:[#allocation2 + $0x48] sm:$0xff] %v674
        %707 = vst [vmem:[#allocation2 + $0x50] sm:$0xff] %v675
        %708 = vst [vmem:[#allocation2 + $0x58] sm:$0xff] %v676
        %709 = vst [vmem:[#allocation2 + $0x60] sm:$0xff] %v677
        %710 = vst [vmem:[#allocation2 + $0x68] sm:$0xff] %v678
        %711 = vst [vmem:[#allocation2 + $0x70] sm:$0xff] %v679
        %712 = vst [vmem:[#allocation2 + $0x78] sm:$0xff] %v680
        %713 = vst [vmem:[#allocation2 + $0x80] sm:$0xff] %v681
        %714 = vst [vmem:[#allocation2 + $0x88] sm:$0xff] %v682
        %715 = vst [vmem:[#allocation2 + $0x90] sm:$0xff] %v683
        %716 = vst [vmem:[#allocation2 + $0x98] sm:$0xff] %v684
        %717 = vst [vmem:[#allocation2 + $0xa0] sm:$0xff] %v685
        %718 = vst [vmem:[#allocation2 + $0xa8] sm:$0xff] %v686
        %719 = vst [vmem:[#allocation2 + $0xb0] sm:$0xff] %v687
        %720 = vst [vmem:[#allocation2 + $0xb8] sm:$0xff] %v688
        %721 = vst [vmem:[#allocation2 + $0xc0] sm:$0xff] %v689
        %722 = vst [vmem:[#allocation2 + $0xc8] sm:$0xff] %v690
        %723 = vst [vmem:[#allocation2 + $0xd0] sm:$0xff] %v691
        %724 = vst [vmem:[#allocation2 + $0xd8] sm:$0xff] %v692
        %725 = vst [vmem:[#allocation2 + $0xe0] sm:$0xff] %v693
        %726 = vst [vmem:[#allocation2 + $0xe8] sm:$0xff] %v694
        %727 = vst [vmem:[#allocation2 + $0xf0] sm:$0xff] %v695
        %728 = vst [vmem:[#allocation2 + $0xf8] sm:$0xff] %v696
        // Predicated region
        $region45: #{tpu_custom_call.1} parent=31 // pred_check
          %p729 = pneg %p244
        $region46: #{tpu_custom_call.1} parent=31 // pred_check_branch
          %731 = sbr.rel (%p729) target = $region48
        $region47: #{tpu_custom_call.1} parent=31 // pred_region
          %v732 = vld [vmem:[#allocation2] sm:$0xff]
          %v733 = vld [vmem:[#allocation2 + $0x8] sm:$0xff]
          %v734 = vld [vmem:[#allocation2 + $0x10] sm:$0xff]
          %v735 = vld [vmem:[#allocation2 + $0x18] sm:$0xff]
          %v736 = vld [vmem:[#allocation2 + $0x20] sm:$0xff]
          %v737 = vld [vmem:[#allocation2 + $0x28] sm:$0xff]
          %v738 = vld [vmem:[#allocation2 + $0x30] sm:$0xff]
          %v739 = vld [vmem:[#allocation2 + $0x38] sm:$0xff]
          %v740 = vld [vmem:[#allocation2 + $0x40] sm:$0xff]
          %v741 = vld [vmem:[#allocation2 + $0x48] sm:$0xff]
          %v742 = vld [vmem:[#allocation2 + $0x50] sm:$0xff]
          %v743 = vld [vmem:[#allocation2 + $0x58] sm:$0xff]
          %v744 = vld [vmem:[#allocation2 + $0x60] sm:$0xff]
          %v745 = vld [vmem:[#allocation2 + $0x68] sm:$0xff]
          %v746 = vld [vmem:[#allocation2 + $0x70] sm:$0xff]
          %v747 = vld [vmem:[#allocation2 + $0x78] sm:$0xff]
          %v748 = vld [vmem:[#allocation2 + $0x80] sm:$0xff]
          %v749 = vld [vmem:[#allocation2 + $0x88] sm:$0xff]
          %v750 = vld [vmem:[#allocation2 + $0x90] sm:$0xff]
          %v751 = vld [vmem:[#allocation2 + $0x98] sm:$0xff]
          %v752 = vld [vmem:[#allocation2 + $0xa0] sm:$0xff]
          %v753 = vld [vmem:[#allocation2 + $0xa8] sm:$0xff]
          %v754 = vld [vmem:[#allocation2 + $0xb0] sm:$0xff]
          %v755 = vld [vmem:[#allocation2 + $0xb8] sm:$0xff]
          %v756 = vld [vmem:[#allocation2 + $0xc0] sm:$0xff]
          %v757 = vld [vmem:[#allocation2 + $0xc8] sm:$0xff]
          %v758 = vld [vmem:[#allocation2 + $0xd0] sm:$0xff]
          %v759 = vld [vmem:[#allocation2 + $0xd8] sm:$0xff]
          %v760 = vld [vmem:[#allocation2 + $0xe0] sm:$0xff]
          %v761 = vld [vmem:[#allocation2 + $0xe8] sm:$0xff]
          %v762 = vld [vmem:[#allocation2 + $0xf0] sm:$0xff]
          %v763 = vld [vmem:[#allocation2 + $0xf8] sm:$0xff]
          %v764 = vld [vmem:[%s2] sm:$0x1]
          %v766 = vlaneseq
          %v767 = vshrl.u32 %v766, 7
          %v768 = vsub.s32 0, %v767
          %v769 = vrot.slane %v764, %v768
          %v771 = vadd.f32 %v732, %v769
          %v772 = vadd.f32 %v733, %v769
          %v773 = vadd.f32 %v734, %v769
          %v774 = vadd.f32 %v735, %v769
          %v775 = vadd.f32 %v736, %v769
          %v776 = vadd.f32 %v737, %v769
          %v777 = vadd.f32 %v738, %v769
          %v778 = vadd.f32 %v739, %v769
          %v779 = vadd.f32 %v740, %v769
          %v780 = vadd.f32 %v741, %v769
          %v781 = vadd.f32 %v742, %v769
          %v782 = vadd.f32 %v743, %v769
          %v783 = vadd.f32 %v744, %v769
          %v784 = vadd.f32 %v745, %v769
          %v785 = vadd.f32 %v746, %v769
          %v786 = vadd.f32 %v747, %v769
          %v787 = vadd.f32 %v748, %v769
          %v788 = vadd.f32 %v749, %v769
          %v789 = vadd.f32 %v750, %v769
          %v790 = vadd.f32 %v751, %v769
          %v791 = vadd.f32 %v752, %v769
          %v792 = vadd.f32 %v753, %v769
          %v793 = vadd.f32 %v754, %v769
          %v794 = vadd.f32 %v755, %v769
          %v795 = vadd.f32 %v756, %v769
          %v796 = vadd.f32 %v757, %v769
          %v797 = vadd.f32 %v758, %v769
          %v798 = vadd.f32 %v759, %v769
          %v799 = vadd.f32 %v760, %v769
          %v800 = vadd.f32 %v761, %v769
          %v801 = vadd.f32 %v762, %v769
          %v802 = vadd.f32 %v763, %v769
          %vm803 = vcmp.ge.f32.partialorder %v771, 0.0
          %vm804 = vcmp.ge.f32.partialorder %v772, 0.0
          %vm805 = vcmp.ge.f32.partialorder %v773, 0.0
          %vm806 = vcmp.ge.f32.partialorder %v774, 0.0
          %vm807 = vcmp.ge.f32.partialorder %v775, 0.0
          %vm808 = vcmp.ge.f32.partialorder %v776, 0.0
          %vm809 = vcmp.ge.f32.partialorder %v777, 0.0
          %vm810 = vcmp.ge.f32.partialorder %v778, 0.0
          %vm811 = vcmp.ge.f32.partialorder %v779, 0.0
          %vm812 = vcmp.ge.f32.partialorder %v780, 0.0
          %vm813 = vcmp.ge.f32.partialorder %v781, 0.0
          %vm814 = vcmp.ge.f32.partialorder %v782, 0.0
          %vm815 = vcmp.ge.f32.partialorder %v783, 0.0
          %vm816 = vcmp.ge.f32.partialorder %v784, 0.0
          %vm817 = vcmp.ge.f32.partialorder %v785, 0.0
          %vm818 = vcmp.ge.f32.partialorder %v786, 0.0
          %vm819 = vcmp.ge.f32.partialorder %v787, 0.0
          %vm820 = vcmp.ge.f32.partialorder %v788, 0.0
          %vm821 = vcmp.ge.f32.partialorder %v789, 0.0
          %vm822 = vcmp.ge.f32.partialorder %v790, 0.0
          %vm823 = vcmp.ge.f32.partialorder %v791, 0.0
          %vm824 = vcmp.ge.f32.partialorder %v792, 0.0
          %vm825 = vcmp.ge.f32.partialorder %v793, 0.0
          %vm826 = vcmp.ge.f32.partialorder %v794, 0.0
          %vm827 = vcmp.ge.f32.partialorder %v795, 0.0
          %vm828 = vcmp.ge.f32.partialorder %v796, 0.0
          %vm829 = vcmp.ge.f32.partialorder %v797, 0.0
          %vm830 = vcmp.ge.f32.partialorder %v798, 0.0
          %vm831 = vcmp.ge.f32.partialorder %v799, 0.0
          %vm832 = vcmp.ge.f32.partialorder %v800, 0.0
          %vm833 = vcmp.ge.f32.partialorder %v801, 0.0
          %vm834 = vcmp.ge.f32.partialorder %v802, 0.0
          %v835 = vmul.f32 %v771, 0.2
          %v836 = vmul.f32 %v772, 0.2
          %v837 = vmul.f32 %v773, 0.2
          %v838 = vmul.f32 %v774, 0.2
          %v839 = vmul.f32 %v775, 0.2
          %v840 = vmul.f32 %v776, 0.2
          %v841 = vmul.f32 %v777, 0.2
          %v842 = vmul.f32 %v778, 0.2
          %v843 = vmul.f32 %v779, 0.2
          %v844 = vmul.f32 %v780, 0.2
          %v845 = vmul.f32 %v781, 0.2
          %v846 = vmul.f32 %v782, 0.2
          %v847 = vmul.f32 %v783, 0.2
          %v848 = vmul.f32 %v784, 0.2
          %v849 = vmul.f32 %v785, 0.2
          %v850 = vmul.f32 %v786, 0.2
          %v851 = vmul.f32 %v787, 0.2
          %v852 = vmul.f32 %v788, 0.2
          %v853 = vmul.f32 %v789, 0.2
          %v854 = vmul.f32 %v790, 0.2
          %v855 = vmul.f32 %v791, 0.2
          %v856 = vmul.f32 %v792, 0.2
          %v857 = vmul.f32 %v793, 0.2
          %v858 = vmul.f32 %v794, 0.2
          %v859 = vmul.f32 %v795, 0.2
          %v860 = vmul.f32 %v796, 0.2
          %v861 = vmul.f32 %v797, 0.2
          %v862 = vmul.f32 %v798, 0.2
          %v863 = vmul.f32 %v799, 0.2
          %v864 = vmul.f32 %v800, 0.2
          %v865 = vmul.f32 %v801, 0.2
          %v866 = vmul.f32 %v802, 0.2
          %v867 = vsel %vm803, %v771, %v835
          %v868 = vsel %vm804, %v772, %v836
          %v869 = vsel %vm805, %v773, %v837
          %v870 = vsel %vm806, %v774, %v838
          %v871 = vsel %vm807, %v775, %v839
          %v872 = vsel %vm808, %v776, %v840
          %v873 = vsel %vm809, %v777, %v841
          %v874 = vsel %vm810, %v778, %v842
          %v875 = vsel %vm811, %v779, %v843
          %v876 = vsel %vm812, %v780, %v844
          %v877 = vsel %vm813, %v781, %v845
          %v878 = vsel %vm814, %v782, %v846
          %v879 = vsel %vm815, %v783, %v847
          %v880 = vsel %vm816, %v784, %v848
          %v881 = vsel %vm817, %v785, %v849
          %v882 = vsel %vm818, %v786, %v850
          %v883 = vsel %vm819, %v787, %v851
          %v884 = vsel %vm820, %v788, %v852
          %v885 = vsel %vm821, %v789, %v853
          %v886 = vsel %vm822, %v790, %v854
          %v887 = vsel %vm823, %v791, %v855
          %v888 = vsel %vm824, %v792, %v856
          %v889 = vsel %vm825, %v793, %v857
          %v890 = vsel %vm826, %v794, %v858
          %v891 = vsel %vm827, %v795, %v859
          %v892 = vsel %vm828, %v796, %v860
          %v893 = vsel %vm829, %v797, %v861
          %v894 = vsel %vm830, %v798, %v862
          %v895 = vsel %vm831, %v799, %v863
          %v896 = vsel %vm832, %v800, %v864
          %v897 = vsel %vm833, %v801, %v865
          %v898 = vsel %vm834, %v802, %v866
          %899 = vst [vmem:[%s239] sm:$0xff] %v867
          %900 = vst [vmem:[%s239 + $0x8] sm:$0xff] %v868
          %901 = vst [vmem:[%s239 + $0x10] sm:$0xff] %v869
          %902 = vst [vmem:[%s239 + $0x18] sm:$0xff] %v870
          %903 = vst [vmem:[%s239 + $0x20] sm:$0xff] %v871
          %904 = vst [vmem:[%s239 + $0x28] sm:$0xff] %v872
          %905 = vst [vmem:[%s239 + $0x30] sm:$0xff] %v873
          %906 = vst [vmem:[%s239 + $0x38] sm:$0xff] %v874
          %907 = vst [vmem:[%s239 + $0x40] sm:$0xff] %v875
          %908 = vst [vmem:[%s239 + $0x48] sm:$0xff] %v876
          %909 = vst [vmem:[%s239 + $0x50] sm:$0xff] %v877
          %910 = vst [vmem:[%s239 + $0x58] sm:$0xff] %v878
          %911 = vst [vmem:[%s239 + $0x60] sm:$0xff] %v879
          %912 = vst [vmem:[%s239 + $0x68] sm:$0xff] %v880
          %913 = vst [vmem:[%s239 + $0x70] sm:$0xff] %v881
          %914 = vst [vmem:[%s239 + $0x78] sm:$0xff] %v882
          %915 = vst [vmem:[%s239 + $0x80] sm:$0xff] %v883
          %916 = vst [vmem:[%s239 + $0x88] sm:$0xff] %v884
          %917 = vst [vmem:[%s239 + $0x90] sm:$0xff] %v885
          %918 = vst [vmem:[%s239 + $0x98] sm:$0xff] %v886
          %919 = vst [vmem:[%s239 + $0xa0] sm:$0xff] %v887
          %920 = vst [vmem:[%s239 + $0xa8] sm:$0xff] %v888
          %921 = vst [vmem:[%s239 + $0xb0] sm:$0xff] %v889
          %922 = vst [vmem:[%s239 + $0xb8] sm:$0xff] %v890
          %923 = vst [vmem:[%s239 + $0xc0] sm:$0xff] %v891
          %924 = vst [vmem:[%s239 + $0xc8] sm:$0xff] %v892
          %925 = vst [vmem:[%s239 + $0xd0] sm:$0xff] %v893
          %926 = vst [vmem:[%s239 + $0xd8] sm:$0xff] %v894
          %927 = vst [vmem:[%s239 + $0xe0] sm:$0xff] %v895
          %928 = vst [vmem:[%s239 + $0xe8] sm:$0xff] %v896
          %929 = vst [vmem:[%s239 + $0xf0] sm:$0xff] %v897
          %930 = vst [vmem:[%s239 + $0xf8] sm:$0xff] %v898
        $region48: #{tpu_custom_call.1} parent=31 // pred_fallthru
          _
        %s931 = sand.u32 %s127, 1
        %s932 = scalar_lea.sflag [#allocation5], %s931
        %s933 = sand.u32 %s127, 1
        %s934 = smul.addr %s933, 256
        %s935 = scalar_lea.vmem [#allocation8], %s934
        // Predicated region
        $region49: #{tpu_custom_call.1} parent=31 // pred_check
          %p936 = pneg %p137
        $region50: #{tpu_custom_call.1} parent=31 // pred_check_branch
          %938 = sbr.rel (%p936) target = $region52
        $region51: #{tpu_custom_call.1} parent=31 // pred_region
          %s939 = smul.u32 32, %s27
          %s941 = ssub.s32 4096, 4096
          %942 = vsyncadd %s932, %s941
          %s943 = smul.addr %s26, 128
          %s944 = sadd.s32 %s939, %s943
          %s945 = smul.addr %s944, 128
          %s946 = scalar_lea.hbm %s3, %s945
          %s947 = sshll.u32 %s935, 4
          %s948 = int_to_ptr.vmem [resolvable:$true] %s947
          %953 = dma.vmem_to_hbm [thread:$0]  %s948, 4096, %s946, %s932, 128, 128, 8
        $region52: #{tpu_custom_call.1} parent=31 // pred_fallthru
          _
      $region32: #{tpu_custom_call.1} parent=5 // pred_fallthru
        _
      %p954 = scmp.le.s32.totalorder 2, %s16
      // Predicated region
      $region53: #{tpu_custom_call.1} parent=5 // pred_check
        %p955 = pneg %p954
      $region54: #{tpu_custom_call.1} parent=5 // pred_check_branch
        %957 = sbr.rel (%p955) target = $region56
      $region55: #{tpu_custom_call.1} parent=5 // pred_region
        %s958 = ssub.s32 %s16, 2
        // Predicated region
        $region57: #{tpu_custom_call.1} parent=55 // pred_check
          %p959 = pneg %p143
        $region58: #{tpu_custom_call.1} parent=55 // pred_check_branch
          %961 = sbr.rel (%p959) target = $region60
        $region59: #{tpu_custom_call.1} parent=55 // pred_region
          %s962 = sand.u32 %s128, 1
          %s963 = scalar_lea.sflag [#allocation5], %s962
          %s964 = sand.u32 %s128, 1
          %s965 = smul.addr %s964, 256
          %s966 = scalar_lea.vmem [#allocation8], %s965
          %967 = dma.done %s963, 4096
        $region60: #{tpu_custom_call.1} parent=55 // pred_fallthru
          _
      $region56: #{tpu_custom_call.1} parent=5 // pred_fallthru
        _
    $region6: #{tpu_custom_call.1} parent=1 // loop_footer
      %s20 = sadd.s32 1, %s16
    $region7: #{tpu_custom_call.1} parent=1 // loop_footer_branch
      %15 = sbr.rel target = $region3
    $region8: #{tpu_custom_call.1} parent=1 // loop_exit
      _
    %968 = vsyncpa [#allocation4], 1
    %s969 = scalar_lea.sflag [#allocation4], 1
    %970 = vsyncpa %s969, 1
    %971 = vsyncpa [#allocation7], 1
    %972 = vsyncpa [#allocation5], 1
    %s973 = scalar_lea.sflag [#allocation5], 1
    %974 = vsyncpa %s973, 1

</llo_original>
